<compile_context>
chip_gen: v6e
topology: v6e:2x2x1
jax: 0.10.0
libtpu: 0.0.40
codegen_flags: <defaults>
</compile_context>

<pallas_src>
import jax
import jax.numpy as jnp
from jax.experimental import pallas as pl
from jax.experimental.pallas import tpu as pltpu


def rnn_kernel(x_ref, h0_ref, w2_ref, wih_ref, bias_ref, w0_ref, b0_ref,
               out_ref, logits_ref):
    """Fused recurrence + input term + hidden writeback + logits projection.

    x_ref     : VMEM (seq, batch, 1)   input scalars (input_size == 1)
    h0_ref    : VMEM (batch, hidden)   initial hidden state
    w2_ref    : VMEM (hidden, hidden)  2 * (W_hh.T + context * W_hh_bias.T)
    wih_ref   : VMEM (1, hidden)       W_ih[:, 0]
    bias_ref  : VMEM (1, hidden)       b_h - sum(W_eff, axis=0)   (folds the "-1" of 2h-1)
    w0_ref    : VMEM (1, hidden)       W[0, :]   (only logits[:, :, 0] is returned)
    b0_ref    : VMEM (1, 1)            b[0]
    out_ref   : VMEM (batch, seq, hidden)  hidden state per timestep (module layout)
    logits_ref: VMEM (batch, seq)          logits[:, :, 0]
    """
    seq_len = x_ref.shape[0]

    # Hoist all loads out of the unrolled loop (a handful of vregs, no spill risk).
    xs = x_ref[...]            # (seq, batch, 1)
    w2 = w2_ref[...]           # (hidden, hidden)
    wih = wih_ref[...]         # (1, hidden)
    bias = bias_ref[...]       # (1, hidden)
    w0 = w0_ref[...]           # (1, hidden)
    b0 = b0_ref[...]           # (1, 1)
    h = h0_ref[...]            # (batch, hidden)

    # seq_len is static & small -> fully unrolled; scheduler overlaps the per-step
    # store / input fmadd / logits reduce with the MXU+EUP critical chain.
    for t in range(seq_len):
        c0_t = xs[t] * wih + bias                                   # VPU fmadd (off chain)
        pre = c0_t + jnp.dot(h, w2, preferred_element_type=jnp.float32)  # MXU
        h = 0.5 * jnp.tanh(0.5 * pre) + 0.5                         # sigmoid via 1 EUP op
        out_ref[:, t, :] = h
        # logits[:, t] = h @ W[0] + b[0]  -- XLU lane reduce, off the recurrence path.
        logits_ref[:, t:t + 1] = jnp.sum(h * w0, axis=1, keepdims=True) + b0


@jax.jit
def rnn_forward(x, h0, W_ih, W_hh, W_hh_bias, b_h, W, b, context=0.0):
    """x: (seq_len, batch) f32 — same axis convention as the PyTorch module."""
    seq_len, batch = x.shape
    hidden = W_hh.shape[0]
    f32 = jnp.float32

    x3 = x.astype(f32).reshape(seq_len, batch, 1)
    h0 = h0.astype(f32)

    # Fold `context` into one effective recurrent weight and fold the "2h-1" affine
    # map into weights/bias so the kernel loop body is exactly one matmul:
    #   (2h-1) @ W_eff = h @ (2*W_eff) - sum(W_eff, axis=0)
    W_eff = W_hh.T.astype(f32) + context * W_hh_bias.T.astype(f32)   # (hidden, hidden)
    w2 = 2.0 * W_eff
    bias_fold = (b_h.astype(f32) - jnp.sum(W_eff, axis=0)).reshape(1, hidden)
    wih_row = W_ih.astype(f32)[:, 0].reshape(1, hidden)              # input_size == 1
    w0 = W.astype(f32)[0].reshape(1, hidden)
    b0 = b.astype(f32)[0].reshape(1, 1)

    vmem = pl.BlockSpec(memory_space=pltpu.MemorySpace.VMEM)

    out, logits = pl.pallas_call(
        rnn_kernel,
        out_shape=(
            jax.ShapeDtypeStruct((batch, seq_len, hidden), f32),
            jax.ShapeDtypeStruct((batch, seq_len), f32),
        ),
        in_specs=[vmem] * 7,
        out_specs=(vmem, vmem),
    )(x3, h0, w2, wih_row, bias_fold, w0, b0)

    # Module returns (logits[:, :, 0], out); both come straight out of the kernel.
    return logits, out


def rnn_reference(x, h0, W_ih, W_hh, W_hh_bias, b_h, W, b, context=0.0):
    """Pure-JAX reference mirroring the PyTorch forward exactly (high-precision dots)."""
    hp = jax.lax.Precision.HIGHEST
    seq_len, batch = x.shape
    h = h0
    outs = []
    for t in range(seq_len):
        x_t = x[t, :][:, None]                                       # (batch, 1)
        c0 = jnp.matmul(x_t, W_ih.T, precision=hp)
        c1 = jnp.matmul(2 * h - 1, W_hh.T, precision=hp)
        c2 = context * jnp.matmul(2 * h - 1, W_hh_bias.T, precision=hp)
        h = jax.nn.sigmoid(c0 + c1 + c2 + b_h)
        outs.append(h)
    out = jnp.stack(outs, axis=1)                                    # (batch, seq, hidden)
    y = jnp.matmul(out, W.T, precision=hp) + b
    return y[:, :, 0], out


if __name__ == "__main__":
    # Small deterministic config consistent with the module's forward
    input_size, hidden_size, output_size = 1, 32, 4   # matmul shapes force input_size == 1
    seq_len, batch = 8, 2
    context = 0.0

    key = jax.random.PRNGKey(0)
    k = jax.random.split(key, 8)

    # Parameter init matching the module's __init__ distributions (deterministic here)
    W_ih      = jax.random.normal(k[0], (hidden_size, input_size)) * 0.05 + 0.4
    W_hh      = jax.random.normal(k[1], (hidden_size, hidden_size)) * 0.2
    W_hh_bias = jax.random.normal(k[2], (hidden_size, hidden_size)) * 0.01 + 0.5
    b_h       = jnp.zeros((hidden_size,), jnp.float32)
    W         = jax.random.normal(k[3], (output_size, hidden_size)) * 0.1 + 0.5
    b         = jnp.zeros((output_size,), jnp.float32)

    # Inputs: x is (seq_len, batch).
    # TODO(synk): PyTorch draws h0 with torch.randn inside forward(); here it is
    # generated deterministically on the host and shared by kernel and reference.
    x  = jax.random.normal(k[4], (seq_len, batch), jnp.float32)
    h0 = jax.random.normal(k[5], (batch, hidden_size), jnp.float32) * 0.01 + 0.5

    y, out = rnn_forward(x, h0, W_ih, W_hh, W_hh_bias, b_h, W, b, context)
    jax.block_until_ready((y, out))

    y_ref, out_ref = rnn_reference(x, h0, W_ih, W_hh, W_hh_bias, b_h, W, b, context)
    assert y.shape == (batch, seq_len)
    assert out.shape == (batch, seq_len, hidden_size)
    # Weight/bias folding + tanh-form sigmoid re-associate a little fp error vs the
    # literal reference; 1e-4 keeps a meaningful f32-level check without flakiness.
    assert jnp.allclose(out, out_ref, atol=1e-4, rtol=1e-4)
    assert jnp.allclose(y, y_ref, atol=1e-4, rtol=1e-4)

    print("KERNEL_OK")
</pallas_src>

<mosaic_0001>
module attributes {stable_mosaic.version = 11 : i64} {
  func.func @rnn_kernel(%arg0: memref<8x2x1xf32, #tpu.memory_space<vmem>>, %arg1: memref<2x32xf32, #tpu.memory_space<vmem>>, %arg2: memref<32x32xf32, #tpu.memory_space<vmem>>, %arg3: memref<1x32xf32, #tpu.memory_space<vmem>>, %arg4: memref<1x32xf32, #tpu.memory_space<vmem>>, %arg5: memref<1x32xf32, #tpu.memory_space<vmem>>, %arg6: memref<1x1xf32, #tpu.memory_space<vmem>>, %arg7: memref<2x8x32xf32, #tpu.memory_space<vmem>>, %arg8: memref<2x8xf32, #tpu.memory_space<vmem>>) attributes {dimension_semantics = [], scalar_prefetch = 0 : i64, scratch_operands = 0 : i64, tpu.core_type = #tpu.core_type<tc>} {
    %c0 = arith.constant 0 : index
    %c0_0 = arith.constant 0 : index
    %c0_1 = arith.constant 0 : index
    %0 = vector.load %arg0[%c0, %c0_0, %c0_1] : memref<8x2x1xf32, #tpu.memory_space<vmem>>, vector<8x2x1xf32>
    %c0_2 = arith.constant 0 : index
    %c0_3 = arith.constant 0 : index
    %1 = vector.load %arg2[%c0_2, %c0_3] : memref<32x32xf32, #tpu.memory_space<vmem>>, vector<32x32xf32>
    %c0_4 = arith.constant 0 : index
    %c0_5 = arith.constant 0 : index
    %2 = vector.load %arg3[%c0_4, %c0_5] : memref<1x32xf32, #tpu.memory_space<vmem>>, vector<1x32xf32>
    %c0_6 = arith.constant 0 : index
    %c0_7 = arith.constant 0 : index
    %3 = vector.load %arg4[%c0_6, %c0_7] : memref<1x32xf32, #tpu.memory_space<vmem>>, vector<1x32xf32>
    %c0_8 = arith.constant 0 : index
    %c0_9 = arith.constant 0 : index
    %4 = vector.load %arg5[%c0_8, %c0_9] : memref<1x32xf32, #tpu.memory_space<vmem>>, vector<1x32xf32>
    %c0_10 = arith.constant 0 : index
    %c0_11 = arith.constant 0 : index
    %5 = vector.load %arg6[%c0_10, %c0_11] : memref<1x1xf32, #tpu.memory_space<vmem>>, vector<1x1xf32>
    %c0_12 = arith.constant 0 : index
    %c0_13 = arith.constant 0 : index
    %6 = vector.load %arg1[%c0_12, %c0_13] : memref<2x32xf32, #tpu.memory_space<vmem>>, vector<2x32xf32>
    %7 = vector.extract_strided_slice %0 {offsets = [0, 0, 0], sizes = [1, 2, 1], strides = [1, 1, 1]} : vector<8x2x1xf32> to vector<1x2x1xf32>
    %8 = vector.shape_cast %7 : vector<1x2x1xf32> to vector<2x1xf32>
    %9 = vector.broadcast %8 : vector<2x1xf32> to vector<2x32xf32>
    %10 = vector.broadcast %2 : vector<1x32xf32> to vector<2x32xf32>
    %11 = arith.mulf %9, %10 : vector<2x32xf32>
    %12 = vector.broadcast %3 : vector<1x32xf32> to vector<2x32xf32>
    %13 = arith.addf %11, %12 : vector<2x32xf32>
    %cst = arith.constant dense<0.000000e+00> : vector<2x32xf32>
    %14 = tpu.matmul %6, %1, %cst {dimension_numbers = #tpu.dot_dimension_numbers<[1], [0], [0], [1], [0, 0, 1, 1], [], []>} : vector<2x32xf32>, vector<32x32xf32>, vector<2x32xf32> -> vector<2x32xf32>
    %15 = arith.addf %13, %14 : vector<2x32xf32>
    %cst_14 = arith.constant 5.000000e-01 : f32
    %16 = vector.broadcast %cst_14 : f32 to vector<2x32xf32>
    %17 = arith.mulf %16, %15 : vector<2x32xf32>
    %18 = math.tanh %17 : vector<2x32xf32>
    %cst_15 = arith.constant 5.000000e-01 : f32
    %19 = vector.broadcast %cst_15 : f32 to vector<2x32xf32>
    %20 = arith.mulf %19, %18 : vector<2x32xf32>
    %cst_16 = arith.constant 5.000000e-01 : f32
    %21 = vector.broadcast %cst_16 : f32 to vector<2x32xf32>
    %22 = arith.addf %20, %21 : vector<2x32xf32>
    %c0_17 = arith.constant 0 : index
    %c0_18 = arith.constant 0 : index
    %c0_19 = arith.constant 0 : index
    %23 = vector.load %arg7[%c0_17, %c0_18, %c0_19] : memref<2x8x32xf32, #tpu.memory_space<vmem>>, vector<2x1x32xf32>
    %24 = vector.shape_cast %23 : vector<2x1x32xf32> to vector<2x32xf32>
    %25 = vector.shape_cast %22 : vector<2x32xf32> to vector<2x1x32xf32>
    tpu.vector_store %arg7[%c0_17, %c0_18, %c0_19], %25 {strides = array<i32>} : memref<2x8x32xf32, #tpu.memory_space<vmem>>, vector<2x1x32xf32>,
    %26 = vector.broadcast %4 : vector<1x32xf32> to vector<2x32xf32>
    %27 = arith.mulf %22, %26 : vector<2x32xf32>
    %cst_20 = arith.constant dense<0.000000e+00> : vector<2xf32>
    %28 = vector.multi_reduction <add>, %27, %cst_20 [1] : vector<2x32xf32> to vector<2xf32>
    %29 = vector.shape_cast %28 : vector<2xf32> to vector<2x1xf32>
    %30 = vector.broadcast %5 : vector<1x1xf32> to vector<2x1xf32>
    %31 = arith.addf %29, %30 : vector<2x1xf32>
    %c0_21 = arith.constant 0 : index
    %c0_22 = arith.constant 0 : index
    %32 = vector.load %arg8[%c0_21, %c0_22] : memref<2x8xf32, #tpu.memory_space<vmem>>, vector<2x1xf32>
    tpu.vector_store %arg8[%c0_21, %c0_22], %31 {strides = array<i32>} : memref<2x8xf32, #tpu.memory_space<vmem>>, vector<2x1xf32>,
    %33 = vector.extract_strided_slice %0 {offsets = [1, 0, 0], sizes = [1, 2, 1], strides = [1, 1, 1]} : vector<8x2x1xf32> to vector<1x2x1xf32>
    %34 = vector.shape_cast %33 : vector<1x2x1xf32> to vector<2x1xf32>
    %35 = vector.broadcast %34 : vector<2x1xf32> to vector<2x32xf32>
    %36 = vector.broadcast %2 : vector<1x32xf32> to vector<2x32xf32>
    %37 = arith.mulf %35, %36 : vector<2x32xf32>
    %38 = vector.broadcast %3 : vector<1x32xf32> to vector<2x32xf32>
    %39 = arith.addf %37, %38 : vector<2x32xf32>
    %cst_23 = arith.constant dense<0.000000e+00> : vector<2x32xf32>
    %40 = tpu.matmul %22, %1, %cst_23 {dimension_numbers = #tpu.dot_dimension_numbers<[1], [0], [0], [1], [0, 0, 1, 1], [], []>} : vector<2x32xf32>, vector<32x32xf32>, vector<2x32xf32> -> vector<2x32xf32>
    %41 = arith.addf %39, %40 : vector<2x32xf32>
    %cst_24 = arith.constant 5.000000e-01 : f32
    %42 = vector.broadcast %cst_24 : f32 to vector<2x32xf32>
    %43 = arith.mulf %42, %41 : vector<2x32xf32>
    %44 = math.tanh %43 : vector<2x32xf32>
    %cst_25 = arith.constant 5.000000e-01 : f32
    %45 = vector.broadcast %cst_25 : f32 to vector<2x32xf32>
    %46 = arith.mulf %45, %44 : vector<2x32xf32>
    %cst_26 = arith.constant 5.000000e-01 : f32
    %47 = vector.broadcast %cst_26 : f32 to vector<2x32xf32>
    %48 = arith.addf %46, %47 : vector<2x32xf32>
    %c0_27 = arith.constant 0 : index
    %c1 = arith.constant 1 : index
    %c0_28 = arith.constant 0 : index
    %49 = vector.load %arg7[%c0_27, %c1, %c0_28] : memref<2x8x32xf32, #tpu.memory_space<vmem>>, vector<2x1x32xf32>
    %50 = vector.shape_cast %49 : vector<2x1x32xf32> to vector<2x32xf32>
    %51 = vector.shape_cast %48 : vector<2x32xf32> to vector<2x1x32xf32>
    tpu.vector_store %arg7[%c0_27, %c1, %c0_28], %51 {strides = array<i32>} : memref<2x8x32xf32, #tpu.memory_space<vmem>>, vector<2x1x32xf32>,
    %52 = vector.broadcast %4 : vector<1x32xf32> to vector<2x32xf32>
    %53 = arith.mulf %48, %52 : vector<2x32xf32>
    %cst_29 = arith.constant dense<0.000000e+00> : vector<2xf32>
    %54 = vector.multi_reduction <add>, %53, %cst_29 [1] : vector<2x32xf32> to vector<2xf32>
    %55 = vector.shape_cast %54 : vector<2xf32> to vector<2x1xf32>
    %56 = vector.broadcast %5 : vector<1x1xf32> to vector<2x1xf32>
    %57 = arith.addf %55, %56 : vector<2x1xf32>
    %c0_30 = arith.constant 0 : index
    %c1_31 = arith.constant 1 : index
    %58 = vector.load %arg8[%c0_30, %c1_31] : memref<2x8xf32, #tpu.memory_space<vmem>>, vector<2x1xf32>
    tpu.vector_store %arg8[%c0_30, %c1_31], %57 {strides = array<i32>} : memref<2x8xf32, #tpu.memory_space<vmem>>, vector<2x1xf32>,
    %59 = vector.extract_strided_slice %0 {offsets = [2, 0, 0], sizes = [1, 2, 1], strides = [1, 1, 1]} : vector<8x2x1xf32> to vector<1x2x1xf32>
    %60 = vector.shape_cast %59 : vector<1x2x1xf32> to vector<2x1xf32>
    %61 = vector.broadcast %60 : vector<2x1xf32> to vector<2x32xf32>
    %62 = vector.broadcast %2 : vector<1x32xf32> to vector<2x32xf32>
    %63 = arith.mulf %61, %62 : vector<2x32xf32>
    %64 = vector.broadcast %3 : vector<1x32xf32> to vector<2x32xf32>
    %65 = arith.addf %63, %64 : vector<2x32xf32>
    %cst_32 = arith.constant dense<0.000000e+00> : vector<2x32xf32>
    %66 = tpu.matmul %48, %1, %cst_32 {dimension_numbers = #tpu.dot_dimension_numbers<[1], [0], [0], [1], [0, 0, 1, 1], [], []>} : vector<2x32xf32>, vector<32x32xf32>, vector<2x32xf32> -> vector<2x32xf32>
    %67 = arith.addf %65, %66 : vector<2x32xf32>
    %cst_33 = arith.constant 5.000000e-01 : f32
    %68 = vector.broadcast %cst_33 : f32 to vector<2x32xf32>
    %69 = arith.mulf %68, %67 : vector<2x32xf32>
    %70 = math.tanh %69 : vector<2x32xf32>
    %cst_34 = arith.constant 5.000000e-01 : f32
    %71 = vector.broadcast %cst_34 : f32 to vector<2x32xf32>
    %72 = arith.mulf %71, %70 : vector<2x32xf32>
    %cst_35 = arith.constant 5.000000e-01 : f32
    %73 = vector.broadcast %cst_35 : f32 to vector<2x32xf32>
    %74 = arith.addf %72, %73 : vector<2x32xf32>
    %c0_36 = arith.constant 0 : index
    %c2 = arith.constant 2 : index
    %c0_37 = arith.constant 0 : index
    %75 = vector.load %arg7[%c0_36, %c2, %c0_37] : memref<2x8x32xf32, #tpu.memory_space<vmem>>, vector<2x1x32xf32>
    %76 = vector.shape_cast %75 : vector<2x1x32xf32> to vector<2x32xf32>
    %77 = vector.shape_cast %74 : vector<2x32xf32> to vector<2x1x32xf32>
    tpu.vector_store %arg7[%c0_36, %c2, %c0_37], %77 {strides = array<i32>} : memref<2x8x32xf32, #tpu.memory_space<vmem>>, vector<2x1x32xf32>,
    %78 = vector.broadcast %4 : vector<1x32xf32> to vector<2x32xf32>
    %79 = arith.mulf %74, %78 : vector<2x32xf32>
    %cst_38 = arith.constant dense<0.000000e+00> : vector<2xf32>
    %80 = vector.multi_reduction <add>, %79, %cst_38 [1] : vector<2x32xf32> to vector<2xf32>
    %81 = vector.shape_cast %80 : vector<2xf32> to vector<2x1xf32>
    %82 = vector.broadcast %5 : vector<1x1xf32> to vector<2x1xf32>
    %83 = arith.addf %81, %82 : vector<2x1xf32>
    %c0_39 = arith.constant 0 : index
    %c2_40 = arith.constant 2 : index
    %84 = vector.load %arg8[%c0_39, %c2_40] : memref<2x8xf32, #tpu.memory_space<vmem>>, vector<2x1xf32>
    tpu.vector_store %arg8[%c0_39, %c2_40], %83 {strides = array<i32>} : memref<2x8xf32, #tpu.memory_space<vmem>>, vector<2x1xf32>,
    %85 = vector.extract_strided_slice %0 {offsets = [3, 0, 0], sizes = [1, 2, 1], strides = [1, 1, 1]} : vector<8x2x1xf32> to vector<1x2x1xf32>
    %86 = vector.shape_cast %85 : vector<1x2x1xf32> to vector<2x1xf32>
    %87 = vector.broadcast %86 : vector<2x1xf32> to vector<2x32xf32>
    %88 = vector.broadcast %2 : vector<1x32xf32> to vector<2x32xf32>
    %89 = arith.mulf %87, %88 : vector<2x32xf32>
    %90 = vector.broadcast %3 : vector<1x32xf32> to vector<2x32xf32>
    %91 = arith.addf %89, %90 : vector<2x32xf32>
    %cst_41 = arith.constant dense<0.000000e+00> : vector<2x32xf32>
    %92 = tpu.matmul %74, %1, %cst_41 {dimension_numbers = #tpu.dot_dimension_numbers<[1], [0], [0], [1], [0, 0, 1, 1], [], []>} : vector<2x32xf32>, vector<32x32xf32>, vector<2x32xf32> -> vector<2x32xf32>
    %93 = arith.addf %91, %92 : vector<2x32xf32>
    %cst_42 = arith.constant 5.000000e-01 : f32
    %94 = vector.broadcast %cst_42 : f32 to vector<2x32xf32>
    %95 = arith.mulf %94, %93 : vector<2x32xf32>
    %96 = math.tanh %95 : vector<2x32xf32>
    %cst_43 = arith.constant 5.000000e-01 : f32
    %97 = vector.broadcast %cst_43 : f32 to vector<2x32xf32>
    %98 = arith.mulf %97, %96 : vector<2x32xf32>
    %cst_44 = arith.constant 5.000000e-01 : f32
    %99 = vector.broadcast %cst_44 : f32 to vector<2x32xf32>
    %100 = arith.addf %98, %99 : vector<2x32xf32>
    %c0_45 = arith.constant 0 : index
    %c3 = arith.constant 3 : index
    %c0_46 = arith.constant 0 : index
    %101 = vector.load %arg7[%c0_45, %c3, %c0_46] : memref<2x8x32xf32, #tpu.memory_space<vmem>>, vector<2x1x32xf32>
    %102 = vector.shape_cast %101 : vector<2x1x32xf32> to vector<2x32xf32>
    %103 = vector.shape_cast %100 : vector<2x32xf32> to vector<2x1x32xf32>
    tpu.vector_store %arg7[%c0_45, %c3, %c0_46], %103 {strides = array<i32>} : memref<2x8x32xf32, #tpu.memory_space<vmem>>, vector<2x1x32xf32>,
    %104 = vector.broadcast %4 : vector<1x32xf32> to vector<2x32xf32>
    %105 = arith.mulf %100, %104 : vector<2x32xf32>
    %cst_47 = arith.constant dense<0.000000e+00> : vector<2xf32>
    %106 = vector.multi_reduction <add>, %105, %cst_47 [1] : vector<2x32xf32> to vector<2xf32>
    %107 = vector.shape_cast %106 : vector<2xf32> to vector<2x1xf32>
    %108 = vector.broadcast %5 : vector<1x1xf32> to vector<2x1xf32>
    %109 = arith.addf %107, %108 : vector<2x1xf32>
    %c0_48 = arith.constant 0 : index
    %c3_49 = arith.constant 3 : index
    %110 = vector.load %arg8[%c0_48, %c3_49] : memref<2x8xf32, #tpu.memory_space<vmem>>, vector<2x1xf32>
    tpu.vector_store %arg8[%c0_48, %c3_49], %109 {strides = array<i32>} : memref<2x8xf32, #tpu.memory_space<vmem>>, vector<2x1xf32>,
    %111 = vector.extract_strided_slice %0 {offsets = [4, 0, 0], sizes = [1, 2, 1], strides = [1, 1, 1]} : vector<8x2x1xf32> to vector<1x2x1xf32>
    %112 = vector.shape_cast %111 : vector<1x2x1xf32> to vector<2x1xf32>
    %113 = vector.broadcast %112 : vector<2x1xf32> to vector<2x32xf32>
    %114 = vector.broadcast %2 : vector<1x32xf32> to vector<2x32xf32>
    %115 = arith.mulf %113, %114 : vector<2x32xf32>
    %116 = vector.broadcast %3 : vector<1x32xf32> to vector<2x32xf32>
    %117 = arith.addf %115, %116 : vector<2x32xf32>
    %cst_50 = arith.constant dense<0.000000e+00> : vector<2x32xf32>
    %118 = tpu.matmul %100, %1, %cst_50 {dimension_numbers = #tpu.dot_dimension_numbers<[1], [0], [0], [1], [0, 0, 1, 1], [], []>} : vector<2x32xf32>, vector<32x32xf32>, vector<2x32xf32> -> vector<2x32xf32>
    %119 = arith.addf %117, %118 : vector<2x32xf32>
    %cst_51 = arith.constant 5.000000e-01 : f32
    %120 = vector.broadcast %cst_51 : f32 to vector<2x32xf32>
    %121 = arith.mulf %120, %119 : vector<2x32xf32>
    %122 = math.tanh %121 : vector<2x32xf32>
    %cst_52 = arith.constant 5.000000e-01 : f32
    %123 = vector.broadcast %cst_52 : f32 to vector<2x32xf32>
    %124 = arith.mulf %123, %122 : vector<2x32xf32>
    %cst_53 = arith.constant 5.000000e-01 : f32
    %125 = vector.broadcast %cst_53 : f32 to vector<2x32xf32>
    %126 = arith.addf %124, %125 : vector<2x32xf32>
    %c0_54 = arith.constant 0 : index
    %c4 = arith.constant 4 : index
    %c0_55 = arith.constant 0 : index
    %127 = vector.load %arg7[%c0_54, %c4, %c0_55] : memref<2x8x32xf32, #tpu.memory_space<vmem>>, vector<2x1x32xf32>
    %128 = vector.shape_cast %127 : vector<2x1x32xf32> to vector<2x32xf32>
    %129 = vector.shape_cast %126 : vector<2x32xf32> to vector<2x1x32xf32>
    tpu.vector_store %arg7[%c0_54, %c4, %c0_55], %129 {strides = array<i32>} : memref<2x8x32xf32, #tpu.memory_space<vmem>>, vector<2x1x32xf32>,
    %130 = vector.broadcast %4 : vector<1x32xf32> to vector<2x32xf32>
    %131 = arith.mulf %126, %130 : vector<2x32xf32>
    %cst_56 = arith.constant dense<0.000000e+00> : vector<2xf32>
    %132 = vector.multi_reduction <add>, %131, %cst_56 [1] : vector<2x32xf32> to vector<2xf32>
    %133 = vector.shape_cast %132 : vector<2xf32> to vector<2x1xf32>
    %134 = vector.broadcast %5 : vector<1x1xf32> to vector<2x1xf32>
    %135 = arith.addf %133, %134 : vector<2x1xf32>
    %c0_57 = arith.constant 0 : index
    %c4_58 = arith.constant 4 : index
    %136 = vector.load %arg8[%c0_57, %c4_58] : memref<2x8xf32, #tpu.memory_space<vmem>>, vector<2x1xf32>
    tpu.vector_store %arg8[%c0_57, %c4_58], %135 {strides = array<i32>} : memref<2x8xf32, #tpu.memory_space<vmem>>, vector<2x1xf32>,
    %137 = vector.extract_strided_slice %0 {offsets = [5, 0, 0], sizes = [1, 2, 1], strides = [1, 1, 1]} : vector<8x2x1xf32> to vector<1x2x1xf32>
    %138 = vector.shape_cast %137 : vector<1x2x1xf32> to vector<2x1xf32>
    %139 = vector.broadcast %138 : vector<2x1xf32> to vector<2x32xf32>
    %140 = vector.broadcast %2 : vector<1x32xf32> to vector<2x32xf32>
    %141 = arith.mulf %139, %140 : vector<2x32xf32>
    %142 = vector.broadcast %3 : vector<1x32xf32> to vector<2x32xf32>
    %143 = arith.addf %141, %142 : vector<2x32xf32>
    %cst_59 = arith.constant dense<0.000000e+00> : vector<2x32xf32>
    %144 = tpu.matmul %126, %1, %cst_59 {dimension_numbers = #tpu.dot_dimension_numbers<[1], [0], [0], [1], [0, 0, 1, 1], [], []>} : vector<2x32xf32>, vector<32x32xf32>, vector<2x32xf32> -> vector<2x32xf32>
    %145 = arith.addf %143, %144 : vector<2x32xf32>
    %cst_60 = arith.constant 5.000000e-01 : f32
    %146 = vector.broadcast %cst_60 : f32 to vector<2x32xf32>
    %147 = arith.mulf %146, %145 : vector<2x32xf32>
    %148 = math.tanh %147 : vector<2x32xf32>
    %cst_61 = arith.constant 5.000000e-01 : f32
    %149 = vector.broadcast %cst_61 : f32 to vector<2x32xf32>
    %150 = arith.mulf %149, %148 : vector<2x32xf32>
    %cst_62 = arith.constant 5.000000e-01 : f32
    %151 = vector.broadcast %cst_62 : f32 to vector<2x32xf32>
    %152 = arith.addf %150, %151 : vector<2x32xf32>
    %c0_63 = arith.constant 0 : index
    %c5 = arith.constant 5 : index
    %c0_64 = arith.constant 0 : index
    %153 = vector.load %arg7[%c0_63, %c5, %c0_64] : memref<2x8x32xf32, #tpu.memory_space<vmem>>, vector<2x1x32xf32>
    %154 = vector.shape_cast %153 : vector<2x1x32xf32> to vector<2x32xf32>
    %155 = vector.shape_cast %152 : vector<2x32xf32> to vector<2x1x32xf32>
    tpu.vector_store %arg7[%c0_63, %c5, %c0_64], %155 {strides = array<i32>} : memref<2x8x32xf32, #tpu.memory_space<vmem>>, vector<2x1x32xf32>,
    %156 = vector.broadcast %4 : vector<1x32xf32> to vector<2x32xf32>
    %157 = arith.mulf %152, %156 : vector<2x32xf32>
    %cst_65 = arith.constant dense<0.000000e+00> : vector<2xf32>
    %158 = vector.multi_reduction <add>, %157, %cst_65 [1] : vector<2x32xf32> to vector<2xf32>
    %159 = vector.shape_cast %158 : vector<2xf32> to vector<2x1xf32>
    %160 = vector.broadcast %5 : vector<1x1xf32> to vector<2x1xf32>
    %161 = arith.addf %159, %160 : vector<2x1xf32>
    %c0_66 = arith.constant 0 : index
    %c5_67 = arith.constant 5 : index
    %162 = vector.load %arg8[%c0_66, %c5_67] : memref<2x8xf32, #tpu.memory_space<vmem>>, vector<2x1xf32>
    tpu.vector_store %arg8[%c0_66, %c5_67], %161 {strides = array<i32>} : memref<2x8xf32, #tpu.memory_space<vmem>>, vector<2x1xf32>,
    %163 = vector.extract_strided_slice %0 {offsets = [6, 0, 0], sizes = [1, 2, 1], strides = [1, 1, 1]} : vector<8x2x1xf32> to vector<1x2x1xf32>
    %164 = vector.shape_cast %163 : vector<1x2x1xf32> to vector<2x1xf32>
    %165 = vector.broadcast %164 : vector<2x1xf32> to vector<2x32xf32>
    %166 = vector.broadcast %2 : vector<1x32xf32> to vector<2x32xf32>
    %167 = arith.mulf %165, %166 : vector<2x32xf32>
    %168 = vector.broadcast %3 : vector<1x32xf32> to vector<2x32xf32>
    %169 = arith.addf %167, %168 : vector<2x32xf32>
    %cst_68 = arith.constant dense<0.000000e+00> : vector<2x32xf32>
    %170 = tpu.matmul %152, %1, %cst_68 {dimension_numbers = #tpu.dot_dimension_numbers<[1], [0], [0], [1], [0, 0, 1, 1], [], []>} : vector<2x32xf32>, vector<32x32xf32>, vector<2x32xf32> -> vector<2x32xf32>
    %171 = arith.addf %169, %170 : vector<2x32xf32>
    %cst_69 = arith.constant 5.000000e-01 : f32
    %172 = vector.broadcast %cst_69 : f32 to vector<2x32xf32>
    %173 = arith.mulf %172, %171 : vector<2x32xf32>
    %174 = math.tanh %173 : vector<2x32xf32>
    %cst_70 = arith.constant 5.000000e-01 : f32
    %175 = vector.broadcast %cst_70 : f32 to vector<2x32xf32>
    %176 = arith.mulf %175, %174 : vector<2x32xf32>
    %cst_71 = arith.constant 5.000000e-01 : f32
    %177 = vector.broadcast %cst_71 : f32 to vector<2x32xf32>
    %178 = arith.addf %176, %177 : vector<2x32xf32>
    %c0_72 = arith.constant 0 : index
    %c6 = arith.constant 6 : index
    %c0_73 = arith.constant 0 : index
    %179 = vector.load %arg7[%c0_72, %c6, %c0_73] : memref<2x8x32xf32, #tpu.memory_space<vmem>>, vector<2x1x32xf32>
    %180 = vector.shape_cast %179 : vector<2x1x32xf32> to vector<2x32xf32>
    %181 = vector.shape_cast %178 : vector<2x32xf32> to vector<2x1x32xf32>
    tpu.vector_store %arg7[%c0_72, %c6, %c0_73], %181 {strides = array<i32>} : memref<2x8x32xf32, #tpu.memory_space<vmem>>, vector<2x1x32xf32>,
    %182 = vector.broadcast %4 : vector<1x32xf32> to vector<2x32xf32>
    %183 = arith.mulf %178, %182 : vector<2x32xf32>
    %cst_74 = arith.constant dense<0.000000e+00> : vector<2xf32>
    %184 = vector.multi_reduction <add>, %183, %cst_74 [1] : vector<2x32xf32> to vector<2xf32>
    %185 = vector.shape_cast %184 : vector<2xf32> to vector<2x1xf32>
    %186 = vector.broadcast %5 : vector<1x1xf32> to vector<2x1xf32>
    %187 = arith.addf %185, %186 : vector<2x1xf32>
    %c0_75 = arith.constant 0 : index
    %c6_76 = arith.constant 6 : index
    %188 = vector.load %arg8[%c0_75, %c6_76] : memref<2x8xf32, #tpu.memory_space<vmem>>, vector<2x1xf32>
    tpu.vector_store %arg8[%c0_75, %c6_76], %187 {strides = array<i32>} : memref<2x8xf32, #tpu.memory_space<vmem>>, vector<2x1xf32>,
    %189 = vector.extract_strided_slice %0 {offsets = [7, 0, 0], sizes = [1, 2, 1], strides = [1, 1, 1]} : vector<8x2x1xf32> to vector<1x2x1xf32>
    %190 = vector.shape_cast %189 : vector<1x2x1xf32> to vector<2x1xf32>
    %191 = vector.broadcast %190 : vector<2x1xf32> to vector<2x32xf32>
    %192 = vector.broadcast %2 : vector<1x32xf32> to vector<2x32xf32>
    %193 = arith.mulf %191, %192 : vector<2x32xf32>
    %194 = vector.broadcast %3 : vector<1x32xf32> to vector<2x32xf32>
    %195 = arith.addf %193, %194 : vector<2x32xf32>
    %cst_77 = arith.constant dense<0.000000e+00> : vector<2x32xf32>
    %196 = tpu.matmul %178, %1, %cst_77 {dimension_numbers = #tpu.dot_dimension_numbers<[1], [0], [0], [1], [0, 0, 1, 1], [], []>} : vector<2x32xf32>, vector<32x32xf32>, vector<2x32xf32> -> vector<2x32xf32>
    %197 = arith.addf %195, %196 : vector<2x32xf32>
    %cst_78 = arith.constant 5.000000e-01 : f32
    %198 = vector.broadcast %cst_78 : f32 to vector<2x32xf32>
    %199 = arith.mulf %198, %197 : vector<2x32xf32>
    %200 = math.tanh %199 : vector<2x32xf32>
    %cst_79 = arith.constant 5.000000e-01 : f32
    %201 = vector.broadcast %cst_79 : f32 to vector<2x32xf32>
    %202 = arith.mulf %201, %200 : vector<2x32xf32>
    %cst_80 = arith.constant 5.000000e-01 : f32
    %203 = vector.broadcast %cst_80 : f32 to vector<2x32xf32>
    %204 = arith.addf %202, %203 : vector<2x32xf32>
    %c0_81 = arith.constant 0 : index
    %c7 = arith.constant 7 : index
    %c0_82 = arith.constant 0 : index
    %205 = vector.load %arg7[%c0_81, %c7, %c0_82] : memref<2x8x32xf32, #tpu.memory_space<vmem>>, vector<2x1x32xf32>
    %206 = vector.shape_cast %205 : vector<2x1x32xf32> to vector<2x32xf32>
    %207 = vector.shape_cast %204 : vector<2x32xf32> to vector<2x1x32xf32>
    tpu.vector_store %arg7[%c0_81, %c7, %c0_82], %207 {strides = array<i32>} : memref<2x8x32xf32, #tpu.memory_space<vmem>>, vector<2x1x32xf32>,
    %208 = vector.broadcast %4 : vector<1x32xf32> to vector<2x32xf32>
    %209 = arith.mulf %204, %208 : vector<2x32xf32>
    %cst_83 = arith.constant dense<0.000000e+00> : vector<2xf32>
    %210 = vector.multi_reduction <add>, %209, %cst_83 [1] : vector<2x32xf32> to vector<2xf32>
    %211 = vector.shape_cast %210 : vector<2xf32> to vector<2x1xf32>
    %212 = vector.broadcast %5 : vector<1x1xf32> to vector<2x1xf32>
    %213 = arith.addf %211, %212 : vector<2x1xf32>
    %c0_84 = arith.constant 0 : index
    %c7_85 = arith.constant 7 : index
    %214 = vector.load %arg8[%c0_84, %c7_85] : memref<2x8xf32, #tpu.memory_space<vmem>>, vector<2x1xf32>
    tpu.vector_store %arg8[%c0_84, %c7_85], %213 {strides = array<i32>} : memref<2x8xf32, #tpu.memory_space<vmem>>, vector<2x1xf32>,
    return
  }
}

</mosaic_0001>

<llo_original>
// kernel: rnn_forward.1
$region0: #{rnn_forward.1}
  #allocation0 [shape = 'u32[]', space=smem, size = 0x4, offset = 0x4, fixed_abs, tag = 'smem constant byte address 0x4 - core index']
  #allocation1 [shape = 'u32[144,128]{1,0:T(1,128)}', space=vmem, size = 0x12000, scoped, tag = 'internal scratch']
  #allocation2 [shape = 'f32[1,1]{1,0:T(1,128)S(1)}', space=vmem, size = 0x200, scoped, tag = 'scoped memory for rnn_forward.1']
  %s0 = inlined_call_operand.vmem [shape: f32[8,2,1], index: 0, kind: input, shape index: {}]
  %s1 = inlined_call_operand.vmem [shape: f32[2,32], index: 1, kind: input, shape index: {}]
  %s2 = inlined_call_operand.vmem [shape: f32[32,32], index: 2, kind: input, shape index: {}]
  %s3 = inlined_call_operand.vmem [shape: f32[1,32], index: 3, kind: input, shape index: {}]
  %s4 = inlined_call_operand.vmem [shape: f32[1,32], index: 4, kind: input, shape index: {}]
  %s5 = inlined_call_operand.vmem [shape: f32[1,32], index: 5, kind: input, shape index: {}]
  %s6 = inlined_call_operand.<no memory space> [shape: f32[1,1], index: 6, kind: input, shape index: {}]
  %s7 = inlined_call_operand.hbm [shape: f32[2,8,32], index: 7, kind: output, shape index: {0}]
  %s8 = inlined_call_operand.hbm [shape: f32[2,8], index: 8, kind: output, shape index: {1}]
  %9 = xla_tuple %s7, %s8
  %s10 = sld [smem:[#allocation0]]
  $region46: #{rnn_forward.1} parent=0
    _
  %s12 = ssub.s32 1, %s10
  %s13 = scalar_select 0, %s12, %s10
  %v14 = vstv %s6
  %15 = vst [vmem:[#allocation2] sm:$0x1] %v14
  $region1: #{rnn_forward.1} parent=0
    #allocation3 [shape = 'u8[8192]{0}', space=vmem, size = 0x2000, scoped, tag = 'output window, operand 0, single buffered']
    #allocation4 [shape = 's32[1]{0}', space=sflag, size = 0x4, scoped, tag = 'scoped memory for rnn_forward.1']
    #allocation5 [shape = 'u8[1024]{0}', space=vmem, size = 0x400, scoped, tag = 'output window, operand 1, single buffered']
    #allocation6 [shape = 's32[1]{0}', space=sflag, size = 0x4, scoped, tag = 'scoped memory for rnn_forward.1']
    %16 = vsyncpa [#allocation4], 0
    %17 = vsyncpa [#allocation6], 0
    // Predicated region
    $region2: #{rnn_forward.1} parent=1 // pred_check
      _
    $region3: #{rnn_forward.1} parent=1 // pred_check_branch
      %19 = sbr.rel (0) target = $region5
    $region4: #{rnn_forward.1} parent=1 // pred_region
      _
    $region5: #{rnn_forward.1} parent=1 // pred_fallthru
      _
    // Predicated region
    $region6: #{rnn_forward.1} parent=1 // pred_check
      _
    $region7: #{rnn_forward.1} parent=1 // pred_check_branch
      %21 = sbr.rel (0) target = $region9
    $region8: #{rnn_forward.1} parent=1 // pred_region
      _
    $region9: #{rnn_forward.1} parent=1 // pred_fallthru
      _
    // Predicated region
    $region10: #{rnn_forward.1} parent=1 // pred_check
      _
    $region11: #{rnn_forward.1} parent=1 // pred_check_branch
      %23 = sbr.rel (0) target = $region13
    $region12: #{rnn_forward.1} parent=1 // pred_region
      _
    $region13: #{rnn_forward.1} parent=1 // pred_fallthru
      _
    // Predicated region
    $region14: #{rnn_forward.1} parent=1 // pred_check
      _
    $region15: #{rnn_forward.1} parent=1 // pred_check_branch
      %25 = sbr.rel (0) target = $region17
    $region16: #{rnn_forward.1} parent=1 // pred_region
      _
    $region17: #{rnn_forward.1} parent=1 // pred_fallthru
      _
    // Predicated region
    $region18: #{rnn_forward.1} parent=1 // pred_check
      _
    $region19: #{rnn_forward.1} parent=1 // pred_check_branch
      %27 = sbr.rel (0) target = $region21
    $region20: #{rnn_forward.1} parent=1 // pred_region
      _
    $region21: #{rnn_forward.1} parent=1 // pred_fallthru
      _
    // Predicated region
    $region22: #{rnn_forward.1} parent=1 // pred_check
      _
    $region23: #{rnn_forward.1} parent=1 // pred_check_branch
      %29 = sbr.rel (0) target = $region25
    $region24: #{rnn_forward.1} parent=1 // pred_region
      _
    $region25: #{rnn_forward.1} parent=1 // pred_fallthru
      _
    // Predicated region
    $region26: #{rnn_forward.1} parent=1 // pred_check
      _
    $region27: #{rnn_forward.1} parent=1 // pred_check_branch
      %31 = sbr.rel (0) target = $region29
    $region28: #{rnn_forward.1} parent=1 // pred_region
      _
    $region29: #{rnn_forward.1} parent=1 // pred_fallthru
      _
    %v32 = vld [vmem:[%s0] sm:$0x3]
    %v33 = vld [vmem:[%s0 + $0x2] sm:$0x3]
    %v34 = vld [vmem:[%s0 + $0x4] sm:$0x3]
    %v35 = vld [vmem:[%s0 + $0x6] sm:$0x3]
    %v36 = vld [vmem:[%s0 + $0x8] sm:$0x3]
    %v37 = vld [vmem:[%s0 + $0xa] sm:$0x3]
    %v38 = vld [vmem:[%s0 + $0xc] sm:$0x3]
    %v39 = vld [vmem:[%s0 + $0xe] sm:$0x3]
    %v40 = vld [vmem:[%s2] sm:$0xff]
    %v41 = vld [vmem:[%s2 + $0x8] sm:$0xff]
    %v42 = vld [vmem:[%s2 + $0x10] sm:$0xff]
    %v43 = vld [vmem:[%s2 + $0x18] sm:$0xff]
    %v44 = vld [vmem:[%s3] sm:$0x1]
    %v45 = vld [vmem:[%s4] sm:$0x1]
    %v46 = vld [vmem:[%s5] sm:$0x1]
    %v47 = vld [vmem:[#allocation2] sm:$0x1]
    %v48 = vld [vmem:[%s1] sm:$0x3]
    %50 = vset.pattern.permute.xlu0 0
    %51 = vperm.xlu0 %50, %v32
    %v52 = vpop.permute.xlu0 %51
    %v55 = vlaneseq
    %v56 = vshrl.u32 %v55, 7
    %v57 = vsub.s32 0, %v56
    %v58 = vrot.slane %v44, %v57
    %v60 = vmul.f32 %v52, %v58
    %v62 = vlaneseq
    %v63 = vshrl.u32 %v62, 7
    %v64 = vsub.s32 0, %v63
    %v65 = vrot.slane %v45, %v64
    %v67 = vadd.f32 %v60, %v65
    %vm68 = vcmask 261120
    %v70 = vsel %vm68, %v48, 0
    %72 = vmatprep.subr.mxu0 0.0
    %73 = vmatpush1.msra.mxu0 0.0
    %74 = vmatprep.subr.mxu0 0.0
    %75 = vmatpush1.msra.mxu0 0.0
    %76 = vmatprep.subr.mxu0 0.0
    %77 = vmatpush1.msra.mxu0 0.0
    %78 = vmatprep.subr.mxu0 0.0
    %79 = vmatpush1.msra.mxu0 0.0
    %80 = vmatprep.subr.mxu0 0.0
    %81 = vmatpush1.msra.mxu0 0.0
    %82 = vmatprep.subr.mxu0 0.0
    %83 = vmatpush1.msra.mxu0 0.0
    %84 = vmatprep.subr.mxu0 0.0
    %85 = vmatpush1.msra.mxu0 0.0
    %86 = vmatprep.subr.mxu0 0.0
    %87 = vmatpush1.msra.mxu0 0.0
    %88 = vmatprep.subr.mxu0 0.0
    %89 = vmatpush1.msra.mxu0 0.0
    %90 = vmatprep.subr.mxu0 0.0
    %91 = vmatpush1.msra.mxu0 0.0
    %92 = vmatprep.subr.mxu0 0.0
    %93 = vmatpush1.msra.mxu0 0.0
    %94 = vmatprep.subr.mxu0 0.0
    %95 = vmatpush1.msra.mxu0 0.0
    %96 = vmatprep.subr.mxu0 0.0
    %97 = vmatpush1.msra.mxu0 %v43
    %98 = vmatprep.subr.mxu0 0.0
    %99 = vmatpush1.msra.mxu0 %v42
    %100 = vmatprep.subr.mxu0 0.0
    %101 = vmatpush1.msra.mxu0 %v41
    %102 = vmatprep.subr.mxu0 0.0
    %103 = vmatpush1.msra.mxu0 %v40
    %104 = vmatprep.subr.mxu0 0.0
    %105 = vmatpush2.msra.mxu0 0.0
    %106 = vmatprep.subr.mxu0 0.0
    %107 = vmatpush2.msra.mxu0 0.0
    %108 = vmatprep.subr.mxu0 0.0
    %109 = vmatpush2.msra.mxu0 0.0
    %110 = vmatprep.subr.mxu0 0.0
    %111 = vmatpush2.msra.mxu0 0.0
    %112 = vmatprep.subr.mxu0 0.0
    %113 = vmatpush2.msra.mxu0 0.0
    %114 = vmatprep.subr.mxu0 0.0
    %115 = vmatpush2.msra.mxu0 0.0
    %116 = vmatprep.subr.mxu0 0.0
    %117 = vmatpush2.msra.mxu0 0.0
    %118 = vmatprep.subr.mxu0 0.0
    %119 = vmatpush2.msra.mxu0 0.0
    %120 = vmatprep.subr.mxu0 0.0
    %121 = vmatpush2.msra.mxu0 0.0
    %122 = vmatprep.subr.mxu0 0.0
    %123 = vmatpush2.msra.mxu0 0.0
    %124 = vmatprep.subr.mxu0 0.0
    %125 = vmatpush2.msra.mxu0 0.0
    %126 = vmatprep.subr.mxu0 0.0
    %127 = vmatpush2.msra.mxu0 0.0
    %128 = vmatprep.subr.mxu0 0.0
    %129 = vmatpush2.msra.mxu0 0.0
    %130 = vmatprep.subr.mxu0 0.0
    %131 = vmatpush2.msra.mxu0 0.0
    %132 = vmatprep.subr.mxu0 0.0
    %133 = vmatpush2.msra.mxu0 0.0
    %134 = vmatprep.subr.mxu0 0.0
    %135 = vmatpush2.msra.mxu0 0.0
    %136 = vmatprep.mubr.f32.mxu0 0.0
    %137 = vmatmul.mubr.f32.gmra.mxu0 %v70
    %v138 = vpop.f32.mrf.mxu0
    %v139 = vadd.f32 0.0, %v138
    %v140 = vpop.f32.mrf.mxu0
    %141 = vdwg.mxu0
    %v142 = vadd.f32 %v67, %v139
    %v143 = vmul.f32 %v142, 0.5
    %v144 = vtanh.pop %v143
    %v145 = vmul.f32 %v144, 0.5
    %v146 = vadd.f32 %v145, 0.5
    %v149 = vunpack.c.l.s4 1966171168
    %v150 = vunpack.c.0.s8 %v149
    %v151 = vlaneseq
    %v152 = vshrl.u32 %v151, 7
    %v153 = vsub.s32 %v150, %v152
    %v154 = vrot.slane %v146, %v153
    %v155 = vcombine.high %v154, %v154
    %v157 = vunpack.c.l.s4 1966171168
    %v158 = vunpack.c.0.s8 %v157
    %v159 = vlaneseq
    %v160 = vshrl.u32 %v159, 7
    %v161 = vsub.s32 %v158, %v160
    %v162 = vrot.slane %v154, %v161
    %v164 = vunpack.c.l.s4 1966171168
    %v165 = vunpack.c.0.s8 %v164
    %v166 = vlaneseq
    %v167 = vshrl.u32 %v166, 7
    %v168 = vsub.s32 %v165, %v167
    %v169 = vrot.slane %v155, %v168
    %vm172 = vcmask 253952
    %173 = vst.msk [vmem:[#allocation3] sm:$0x1] %vm172, %v162
    %174 = vst.msk [vmem:[#allocation3 + $0x8] sm:$0x1] %vm172, %v169
    %v176 = vlaneseq
    %v177 = vshrl.u32 %v176, 7
    %v178 = vsub.s32 0, %v177
    %v179 = vrot.slane %v46, %v178
    %v181 = vmul.f32 %v146, %v179
    %vm182 = vcmask 254976
    %v183 = vsel %vm182, %v181, 0.0
    %184 = vadd.xlane.f32.xlu0 %v183
    %v185 = vpop.xlane.xlu0 %184
    %v187 = vlaneseq
    %v188 = vshrl.u32 %v187, 7
    %v189 = vsub.s32 0, %v188
    %v190 = vrot.slane %v47, %v189
    %v192 = vadd.f32 %v185, %v190
    %vm193 = vcmask 1024
    %194 = vst.msk [vmem:[#allocation5] sm:$0x3] %vm193, %v192
    %196 = vset.pattern.permute.xlu0 0
    %197 = vperm.xlu0 %196, %v33
    %v198 = vpop.permute.xlu0 %197
    %v200 = vmul.f32 %v198, %v58
    %v201 = vadd.f32 %v200, %v65
    %v202 = vsel %vm68, %v146, 0
    %204 = vmatprep.subr.mxu0 0.0
    %205 = vmatpush1.msra.mxu0 0.0
    %206 = vmatprep.subr.mxu0 0.0
    %207 = vmatpush1.msra.mxu0 0.0
    %208 = vmatprep.subr.mxu0 0.0
    %209 = vmatpush1.msra.mxu0 0.0
    %210 = vmatprep.subr.mxu0 0.0
    %211 = vmatpush1.msra.mxu0 0.0
    %212 = vmatprep.subr.mxu0 0.0
    %213 = vmatpush1.msra.mxu0 0.0
    %214 = vmatprep.subr.mxu0 0.0
    %215 = vmatpush1.msra.mxu0 0.0
    %216 = vmatprep.subr.mxu0 0.0
    %217 = vmatpush1.msra.mxu0 0.0
    %218 = vmatprep.subr.mxu0 0.0
    %219 = vmatpush1.msra.mxu0 0.0
    %220 = vmatprep.subr.mxu0 0.0
    %221 = vmatpush1.msra.mxu0 0.0
    %222 = vmatprep.subr.mxu0 0.0
    %223 = vmatpush1.msra.mxu0 0.0
    %224 = vmatprep.subr.mxu0 0.0
    %225 = vmatpush1.msra.mxu0 0.0
    %226 = vmatprep.subr.mxu0 0.0
    %227 = vmatpush1.msra.mxu0 0.0
    %228 = vmatprep.subr.mxu0 0.0
    %229 = vmatpush1.msra.mxu0 %v43
    %230 = vmatprep.subr.mxu0 0.0
    %231 = vmatpush1.msra.mxu0 %v42
    %232 = vmatprep.subr.mxu0 0.0
    %233 = vmatpush1.msra.mxu0 %v41
    %234 = vmatprep.subr.mxu0 0.0
    %235 = vmatpush1.msra.mxu0 %v40
    %236 = vmatprep.subr.mxu0 0.0
    %237 = vmatpush2.msra.mxu0 0.0
    %238 = vmatprep.subr.mxu0 0.0
    %239 = vmatpush2.msra.mxu0 0.0
    %240 = vmatprep.subr.mxu0 0.0
    %241 = vmatpush2.msra.mxu0 0.0
    %242 = vmatprep.subr.mxu0 0.0
    %243 = vmatpush2.msra.mxu0 0.0
    %244 = vmatprep.subr.mxu0 0.0
    %245 = vmatpush2.msra.mxu0 0.0
    %246 = vmatprep.subr.mxu0 0.0
    %247 = vmatpush2.msra.mxu0 0.0
    %248 = vmatprep.subr.mxu0 0.0
    %249 = vmatpush2.msra.mxu0 0.0
    %250 = vmatprep.subr.mxu0 0.0
    %251 = vmatpush2.msra.mxu0 0.0
    %252 = vmatprep.subr.mxu0 0.0
    %253 = vmatpush2.msra.mxu0 0.0
    %254 = vmatprep.subr.mxu0 0.0
    %255 = vmatpush2.msra.mxu0 0.0
    %256 = vmatprep.subr.mxu0 0.0
    %257 = vmatpush2.msra.mxu0 0.0
    %258 = vmatprep.subr.mxu0 0.0
    %259 = vmatpush2.msra.mxu0 0.0
    %260 = vmatprep.subr.mxu0 0.0
    %261 = vmatpush2.msra.mxu0 0.0
    %262 = vmatprep.subr.mxu0 0.0
    %263 = vmatpush2.msra.mxu0 0.0
    %264 = vmatprep.subr.mxu0 0.0
    %265 = vmatpush2.msra.mxu0 0.0
    %266 = vmatprep.subr.mxu0 0.0
    %267 = vmatpush2.msra.mxu0 0.0
    %268 = vmatprep.mubr.f32.mxu0 0.0
    %269 = vmatmul.mubr.f32.gmra.mxu0 %v202
    %v270 = vpop.f32.mrf.mxu0
    %v271 = vadd.f32 0.0, %v270
    %v272 = vpop.f32.mrf.mxu0
    %273 = vdwg.mxu0
    %v274 = vadd.f32 %v201, %v271
    %v275 = vmul.f32 %v274, 0.5
    %v276 = vtanh.pop %v275
    %v277 = vmul.f32 %v276, 0.5
    %v278 = vadd.f32 %v277, 0.5
    %v281 = vunpack.c.l.s4 1966171168
    %v282 = vunpack.c.0.s8 %v281
    %v283 = vlaneseq
    %v284 = vshrl.u32 %v283, 7
    %v285 = vsub.s32 %v282, %v284
    %v286 = vrot.slane %v278, %v285
    %v287 = vcombine.high %v286, %v286
    %v289 = vunpack.c.l.s4 1966171168
    %v290 = vunpack.c.0.s8 %v289
    %v291 = vlaneseq
    %v292 = vshrl.u32 %v291, 7
    %v293 = vsub.s32 %v290, %v292
    %v294 = vrot.slane %v286, %v293
    %v296 = vunpack.c.l.s4 1966171168
    %v297 = vunpack.c.0.s8 %v296
    %v298 = vlaneseq
    %v299 = vshrl.u32 %v298, 7
    %v300 = vsub.s32 %v297, %v299
    %v301 = vrot.slane %v287, %v300
    %304 = vst.msk [vmem:[#allocation3 + $0x1] sm:$0x1] %vm172, %v294
    %305 = vst.msk [vmem:[#allocation3 + $0x9] sm:$0x1] %vm172, %v301
    %v306 = vmul.f32 %v278, %v179
    %v307 = vsel %vm182, %v306, 0.0
    %308 = vadd.xlane.f32.xlu0 %v307
    %v309 = vpop.xlane.xlu0 %308
    %v310 = vadd.f32 %v309, %v190
    %312 = vrot.lane.b32.xlu0 %v310, 1
    %v313 = vpop.permute.xlu0 %312
    %vm315 = vcmask 9224
    %316 = vst.msk [vmem:[#allocation5] sm:$0x3] %vm315, %v313
    %318 = vset.pattern.permute.xlu0 0
    %319 = vperm.xlu0 %318, %v34
    %v320 = vpop.permute.xlu0 %319
    %v322 = vmul.f32 %v320, %v58
    %v323 = vadd.f32 %v322, %v65
    %v324 = vsel %vm68, %v278, 0
    %326 = vmatprep.subr.mxu0 0.0
    %327 = vmatpush1.msra.mxu0 0.0
    %328 = vmatprep.subr.mxu0 0.0
    %329 = vmatpush1.msra.mxu0 0.0
    %330 = vmatprep.subr.mxu0 0.0
    %331 = vmatpush1.msra.mxu0 0.0
    %332 = vmatprep.subr.mxu0 0.0
    %333 = vmatpush1.msra.mxu0 0.0
    %334 = vmatprep.subr.mxu0 0.0
    %335 = vmatpush1.msra.mxu0 0.0
    %336 = vmatprep.subr.mxu0 0.0
    %337 = vmatpush1.msra.mxu0 0.0
    %338 = vmatprep.subr.mxu0 0.0
    %339 = vmatpush1.msra.mxu0 0.0
    %340 = vmatprep.subr.mxu0 0.0
    %341 = vmatpush1.msra.mxu0 0.0
    %342 = vmatprep.subr.mxu0 0.0
    %343 = vmatpush1.msra.mxu0 0.0
    %344 = vmatprep.subr.mxu0 0.0
    %345 = vmatpush1.msra.mxu0 0.0
    %346 = vmatprep.subr.mxu0 0.0
    %347 = vmatpush1.msra.mxu0 0.0
    %348 = vmatprep.subr.mxu0 0.0
    %349 = vmatpush1.msra.mxu0 0.0
    %350 = vmatprep.subr.mxu0 0.0
    %351 = vmatpush1.msra.mxu0 %v43
    %352 = vmatprep.subr.mxu0 0.0
    %353 = vmatpush1.msra.mxu0 %v42
    %354 = vmatprep.subr.mxu0 0.0
    %355 = vmatpush1.msra.mxu0 %v41
    %356 = vmatprep.subr.mxu0 0.0
    %357 = vmatpush1.msra.mxu0 %v40
    %358 = vmatprep.subr.mxu0 0.0
    %359 = vmatpush2.msra.mxu0 0.0
    %360 = vmatprep.subr.mxu0 0.0
    %361 = vmatpush2.msra.mxu0 0.0
    %362 = vmatprep.subr.mxu0 0.0
    %363 = vmatpush2.msra.mxu0 0.0
    %364 = vmatprep.subr.mxu0 0.0
    %365 = vmatpush2.msra.mxu0 0.0
    %366 = vmatprep.subr.mxu0 0.0
    %367 = vmatpush2.msra.mxu0 0.0
    %368 = vmatprep.subr.mxu0 0.0
    %369 = vmatpush2.msra.mxu0 0.0
    %370 = vmatprep.subr.mxu0 0.0
    %371 = vmatpush2.msra.mxu0 0.0
    %372 = vmatprep.subr.mxu0 0.0
    %373 = vmatpush2.msra.mxu0 0.0
    %374 = vmatprep.subr.mxu0 0.0
    %375 = vmatpush2.msra.mxu0 0.0
    %376 = vmatprep.subr.mxu0 0.0
    %377 = vmatpush2.msra.mxu0 0.0
    %378 = vmatprep.subr.mxu0 0.0
    %379 = vmatpush2.msra.mxu0 0.0
    %380 = vmatprep.subr.mxu0 0.0
    %381 = vmatpush2.msra.mxu0 0.0
    %382 = vmatprep.subr.mxu0 0.0
    %383 = vmatpush2.msra.mxu0 0.0
    %384 = vmatprep.subr.mxu0 0.0
    %385 = vmatpush2.msra.mxu0 0.0
    %386 = vmatprep.subr.mxu0 0.0
    %387 = vmatpush2.msra.mxu0 0.0
    %388 = vmatprep.subr.mxu0 0.0
    %389 = vmatpush2.msra.mxu0 0.0
    %390 = vmatprep.mubr.f32.mxu0 0.0
    %391 = vmatmul.mubr.f32.gmra.mxu0 %v324
    %v392 = vpop.f32.mrf.mxu0
    %v393 = vadd.f32 0.0, %v392
    %v394 = vpop.f32.mrf.mxu0
    %395 = vdwg.mxu0
    %v396 = vadd.f32 %v323, %v393
    %v397 = vmul.f32 %v396, 0.5
    %v398 = vtanh.pop %v397
    %v399 = vmul.f32 %v398, 0.5
    %v400 = vadd.f32 %v399, 0.5
    %v403 = vunpack.c.l.s4 1966171168
    %v404 = vunpack.c.0.s8 %v403
    %v405 = vlaneseq
    %v406 = vshrl.u32 %v405, 7
    %v407 = vsub.s32 %v404, %v406
    %v408 = vrot.slane %v400, %v407
    %v409 = vcombine.high %v408, %v408
    %v411 = vunpack.c.l.s4 1966171168
    %v412 = vunpack.c.0.s8 %v411
    %v413 = vlaneseq
    %v414 = vshrl.u32 %v413, 7
    %v415 = vsub.s32 %v412, %v414
    %v416 = vrot.slane %v408, %v415
    %v418 = vunpack.c.l.s4 1966171168
    %v419 = vunpack.c.0.s8 %v418
    %v420 = vlaneseq
    %v421 = vshrl.u32 %v420, 7
    %v422 = vsub.s32 %v419, %v421
    %v423 = vrot.slane %v409, %v422
    %426 = vst.msk [vmem:[#allocation3 + $0x2] sm:$0x1] %vm172, %v416
    %427 = vst.msk [vmem:[#allocation3 + $0xa] sm:$0x1] %vm172, %v423
    %v428 = vmul.f32 %v400, %v179
    %v429 = vsel %vm182, %v428, 0.0
    %430 = vadd.xlane.f32.xlu0 %v429
    %v431 = vpop.xlane.xlu0 %430
    %v432 = vadd.f32 %v431, %v190
    %434 = vrot.lane.b32.xlu0 %v432, 2
    %v435 = vpop.permute.xlu0 %434
    %vm437 = vcmask 17424
    %438 = vst.msk [vmem:[#allocation5] sm:$0x3] %vm437, %v435
    %440 = vset.pattern.permute.xlu0 0
    %441 = vperm.xlu0 %440, %v35
    %v442 = vpop.permute.xlu0 %441
    %v444 = vmul.f32 %v442, %v58
    %v445 = vadd.f32 %v444, %v65
    %v446 = vsel %vm68, %v400, 0
    %448 = vmatprep.subr.mxu0 0.0
    %449 = vmatpush1.msra.mxu0 0.0
    %450 = vmatprep.subr.mxu0 0.0
    %451 = vmatpush1.msra.mxu0 0.0
    %452 = vmatprep.subr.mxu0 0.0
    %453 = vmatpush1.msra.mxu0 0.0
    %454 = vmatprep.subr.mxu0 0.0
    %455 = vmatpush1.msra.mxu0 0.0
    %456 = vmatprep.subr.mxu0 0.0
    %457 = vmatpush1.msra.mxu0 0.0
    %458 = vmatprep.subr.mxu0 0.0
    %459 = vmatpush1.msra.mxu0 0.0
    %460 = vmatprep.subr.mxu0 0.0
    %461 = vmatpush1.msra.mxu0 0.0
    %462 = vmatprep.subr.mxu0 0.0
    %463 = vmatpush1.msra.mxu0 0.0
    %464 = vmatprep.subr.mxu0 0.0
    %465 = vmatpush1.msra.mxu0 0.0
    %466 = vmatprep.subr.mxu0 0.0
    %467 = vmatpush1.msra.mxu0 0.0
    %468 = vmatprep.subr.mxu0 0.0
    %469 = vmatpush1.msra.mxu0 0.0
    %470 = vmatprep.subr.mxu0 0.0
    %471 = vmatpush1.msra.mxu0 0.0
    %472 = vmatprep.subr.mxu0 0.0
    %473 = vmatpush1.msra.mxu0 %v43
    %474 = vmatprep.subr.mxu0 0.0
    %475 = vmatpush1.msra.mxu0 %v42
    %476 = vmatprep.subr.mxu0 0.0
    %477 = vmatpush1.msra.mxu0 %v41
    %478 = vmatprep.subr.mxu0 0.0
    %479 = vmatpush1.msra.mxu0 %v40
    %480 = vmatprep.subr.mxu0 0.0
    %481 = vmatpush2.msra.mxu0 0.0
    %482 = vmatprep.subr.mxu0 0.0
    %483 = vmatpush2.msra.mxu0 0.0
    %484 = vmatprep.subr.mxu0 0.0
    %485 = vmatpush2.msra.mxu0 0.0
    %486 = vmatprep.subr.mxu0 0.0
    %487 = vmatpush2.msra.mxu0 0.0
    %488 = vmatprep.subr.mxu0 0.0
    %489 = vmatpush2.msra.mxu0 0.0
    %490 = vmatprep.subr.mxu0 0.0
    %491 = vmatpush2.msra.mxu0 0.0
    %492 = vmatprep.subr.mxu0 0.0
    %493 = vmatpush2.msra.mxu0 0.0
    %494 = vmatprep.subr.mxu0 0.0
    %495 = vmatpush2.msra.mxu0 0.0
    %496 = vmatprep.subr.mxu0 0.0
    %497 = vmatpush2.msra.mxu0 0.0
    %498 = vmatprep.subr.mxu0 0.0
    %499 = vmatpush2.msra.mxu0 0.0
    %500 = vmatprep.subr.mxu0 0.0
    %501 = vmatpush2.msra.mxu0 0.0
    %502 = vmatprep.subr.mxu0 0.0
    %503 = vmatpush2.msra.mxu0 0.0
    %504 = vmatprep.subr.mxu0 0.0
    %505 = vmatpush2.msra.mxu0 0.0
    %506 = vmatprep.subr.mxu0 0.0
    %507 = vmatpush2.msra.mxu0 0.0
    %508 = vmatprep.subr.mxu0 0.0
    %509 = vmatpush2.msra.mxu0 0.0
    %510 = vmatprep.subr.mxu0 0.0
    %511 = vmatpush2.msra.mxu0 0.0
    %512 = vmatprep.mubr.f32.mxu0 0.0
    %513 = vmatmul.mubr.f32.gmra.mxu0 %v446
    %v514 = vpop.f32.mrf.mxu0
    %v515 = vadd.f32 0.0, %v514
    %v516 = vpop.f32.mrf.mxu0
    %517 = vdwg.mxu0
    %v518 = vadd.f32 %v445, %v515
    %v519 = vmul.f32 %v518, 0.5
    %v520 = vtanh.pop %v519
    %v521 = vmul.f32 %v520, 0.5
    %v522 = vadd.f32 %v521, 0.5
    %v525 = vunpack.c.l.s4 1966171168
    %v526 = vunpack.c.0.s8 %v525
    %v527 = vlaneseq
    %v528 = vshrl.u32 %v527, 7
    %v529 = vsub.s32 %v526, %v528
    %v530 = vrot.slane %v522, %v529
    %v531 = vcombine.high %v530, %v530
    %v533 = vunpack.c.l.s4 1966171168
    %v534 = vunpack.c.0.s8 %v533
    %v535 = vlaneseq
    %v536 = vshrl.u32 %v535, 7
    %v537 = vsub.s32 %v534, %v536
    %v538 = vrot.slane %v530, %v537
    %v540 = vunpack.c.l.s4 1966171168
    %v541 = vunpack.c.0.s8 %v540
    %v542 = vlaneseq
    %v543 = vshrl.u32 %v542, 7
    %v544 = vsub.s32 %v541, %v543
    %v545 = vrot.slane %v531, %v544
    %548 = vst.msk [vmem:[#allocation3 + $0x3] sm:$0x1] %vm172, %v538
    %549 = vst.msk [vmem:[#allocation3 + $0xb] sm:$0x1] %vm172, %v545
    %v550 = vmul.f32 %v522, %v179
    %v551 = vsel %vm182, %v550, 0.0
    %552 = vadd.xlane.f32.xlu0 %v551
    %v553 = vpop.xlane.xlu0 %552
    %v554 = vadd.f32 %v553, %v190
    %556 = vrot.lane.b32.xlu0 %v554, 3
    %v557 = vpop.permute.xlu0 %556
    %vm559 = vcmask 25624
    %560 = vst.msk [vmem:[#allocation5] sm:$0x3] %vm559, %v557
    %562 = vset.pattern.permute.xlu0 0
    %563 = vperm.xlu0 %562, %v36
    %v564 = vpop.permute.xlu0 %563
    %v566 = vmul.f32 %v564, %v58
    %v567 = vadd.f32 %v566, %v65
    %v568 = vsel %vm68, %v522, 0
    %570 = vmatprep.subr.mxu0 0.0
    %571 = vmatpush1.msra.mxu0 0.0
    %572 = vmatprep.subr.mxu0 0.0
    %573 = vmatpush1.msra.mxu0 0.0
    %574 = vmatprep.subr.mxu0 0.0
    %575 = vmatpush1.msra.mxu0 0.0
    %576 = vmatprep.subr.mxu0 0.0
    %577 = vmatpush1.msra.mxu0 0.0
    %578 = vmatprep.subr.mxu0 0.0
    %579 = vmatpush1.msra.mxu0 0.0
    %580 = vmatprep.subr.mxu0 0.0
    %581 = vmatpush1.msra.mxu0 0.0
    %582 = vmatprep.subr.mxu0 0.0
    %583 = vmatpush1.msra.mxu0 0.0
    %584 = vmatprep.subr.mxu0 0.0
    %585 = vmatpush1.msra.mxu0 0.0
    %586 = vmatprep.subr.mxu0 0.0
    %587 = vmatpush1.msra.mxu0 0.0
    %588 = vmatprep.subr.mxu0 0.0
    %589 = vmatpush1.msra.mxu0 0.0
    %590 = vmatprep.subr.mxu0 0.0
    %591 = vmatpush1.msra.mxu0 0.0
    %592 = vmatprep.subr.mxu0 0.0
    %593 = vmatpush1.msra.mxu0 0.0
    %594 = vmatprep.subr.mxu0 0.0
    %595 = vmatpush1.msra.mxu0 %v43
    %596 = vmatprep.subr.mxu0 0.0
    %597 = vmatpush1.msra.mxu0 %v42
    %598 = vmatprep.subr.mxu0 0.0
    %599 = vmatpush1.msra.mxu0 %v41
    %600 = vmatprep.subr.mxu0 0.0
    %601 = vmatpush1.msra.mxu0 %v40
    %602 = vmatprep.subr.mxu0 0.0
    %603 = vmatpush2.msra.mxu0 0.0
    %604 = vmatprep.subr.mxu0 0.0
    %605 = vmatpush2.msra.mxu0 0.0
    %606 = vmatprep.subr.mxu0 0.0
    %607 = vmatpush2.msra.mxu0 0.0
    %608 = vmatprep.subr.mxu0 0.0
    %609 = vmatpush2.msra.mxu0 0.0
    %610 = vmatprep.subr.mxu0 0.0
    %611 = vmatpush2.msra.mxu0 0.0
    %612 = vmatprep.subr.mxu0 0.0
    %613 = vmatpush2.msra.mxu0 0.0
    %614 = vmatprep.subr.mxu0 0.0
    %615 = vmatpush2.msra.mxu0 0.0
    %616 = vmatprep.subr.mxu0 0.0
    %617 = vmatpush2.msra.mxu0 0.0
    %618 = vmatprep.subr.mxu0 0.0
    %619 = vmatpush2.msra.mxu0 0.0
    %620 = vmatprep.subr.mxu0 0.0
    %621 = vmatpush2.msra.mxu0 0.0
    %622 = vmatprep.subr.mxu0 0.0
    %623 = vmatpush2.msra.mxu0 0.0
    %624 = vmatprep.subr.mxu0 0.0
    %625 = vmatpush2.msra.mxu0 0.0
    %626 = vmatprep.subr.mxu0 0.0
    %627 = vmatpush2.msra.mxu0 0.0
    %628 = vmatprep.subr.mxu0 0.0
    %629 = vmatpush2.msra.mxu0 0.0
    %630 = vmatprep.subr.mxu0 0.0
    %631 = vmatpush2.msra.mxu0 0.0
    %632 = vmatprep.subr.mxu0 0.0
    %633 = vmatpush2.msra.mxu0 0.0
    %634 = vmatprep.mubr.f32.mxu0 0.0
    %635 = vmatmul.mubr.f32.gmra.mxu0 %v568
    %v636 = vpop.f32.mrf.mxu0
    %v637 = vadd.f32 0.0, %v636
    %v638 = vpop.f32.mrf.mxu0
    %639 = vdwg.mxu0
    %v640 = vadd.f32 %v567, %v637
    %v641 = vmul.f32 %v640, 0.5
    %v642 = vtanh.pop %v641
    %v643 = vmul.f32 %v642, 0.5
    %v644 = vadd.f32 %v643, 0.5
    %v647 = vunpack.c.l.s4 1966171168
    %v648 = vunpack.c.0.s8 %v647
    %v649 = vlaneseq
    %v650 = vshrl.u32 %v649, 7
    %v651 = vsub.s32 %v648, %v650
    %v652 = vrot.slane %v644, %v651
    %v653 = vcombine.high %v652, %v652
    %v655 = vunpack.c.l.s4 1966171168
    %v656 = vunpack.c.0.s8 %v655
    %v657 = vlaneseq
    %v658 = vshrl.u32 %v657, 7
    %v659 = vsub.s32 %v656, %v658
    %v660 = vrot.slane %v652, %v659
    %v662 = vunpack.c.l.s4 1966171168
    %v663 = vunpack.c.0.s8 %v662
    %v664 = vlaneseq
    %v665 = vshrl.u32 %v664, 7
    %v666 = vsub.s32 %v663, %v665
    %v667 = vrot.slane %v653, %v666
    %670 = vst.msk [vmem:[#allocation3 + $0x4] sm:$0x1] %vm172, %v660
    %671 = vst.msk [vmem:[#allocation3 + $0xc] sm:$0x1] %vm172, %v667
    %v672 = vmul.f32 %v644, %v179
    %v673 = vsel %vm182, %v672, 0.0
    %674 = vadd.xlane.f32.xlu0 %v673
    %v675 = vpop.xlane.xlu0 %674
    %v676 = vadd.f32 %v675, %v190
    %678 = vrot.lane.b32.xlu0 %v676, 4
    %v679 = vpop.permute.xlu0 %678
    %vm681 = vcmask 33824
    %682 = vst.msk [vmem:[#allocation5] sm:$0x3] %vm681, %v679
    %684 = vset.pattern.permute.xlu0 0
    %685 = vperm.xlu0 %684, %v37
    %v686 = vpop.permute.xlu0 %685
    %v688 = vmul.f32 %v686, %v58
    %v689 = vadd.f32 %v688, %v65
    %v690 = vsel %vm68, %v644, 0
    %692 = vmatprep.subr.mxu0 0.0
    %693 = vmatpush1.msra.mxu0 0.0
    %694 = vmatprep.subr.mxu0 0.0
    %695 = vmatpush1.msra.mxu0 0.0
    %696 = vmatprep.subr.mxu0 0.0
    %697 = vmatpush1.msra.mxu0 0.0
    %698 = vmatprep.subr.mxu0 0.0
    %699 = vmatpush1.msra.mxu0 0.0
    %700 = vmatprep.subr.mxu0 0.0
    %701 = vmatpush1.msra.mxu0 0.0
    %702 = vmatprep.subr.mxu0 0.0
    %703 = vmatpush1.msra.mxu0 0.0
    %704 = vmatprep.subr.mxu0 0.0
    %705 = vmatpush1.msra.mxu0 0.0
    %706 = vmatprep.subr.mxu0 0.0
    %707 = vmatpush1.msra.mxu0 0.0
    %708 = vmatprep.subr.mxu0 0.0
    %709 = vmatpush1.msra.mxu0 0.0
    %710 = vmatprep.subr.mxu0 0.0
    %711 = vmatpush1.msra.mxu0 0.0
    %712 = vmatprep.subr.mxu0 0.0
    %713 = vmatpush1.msra.mxu0 0.0
    %714 = vmatprep.subr.mxu0 0.0
    %715 = vmatpush1.msra.mxu0 0.0
    %716 = vmatprep.subr.mxu0 0.0
    %717 = vmatpush1.msra.mxu0 %v43
    %718 = vmatprep.subr.mxu0 0.0
    %719 = vmatpush1.msra.mxu0 %v42
    %720 = vmatprep.subr.mxu0 0.0
    %721 = vmatpush1.msra.mxu0 %v41
    %722 = vmatprep.subr.mxu0 0.0
    %723 = vmatpush1.msra.mxu0 %v40
    %724 = vmatprep.subr.mxu0 0.0
    %725 = vmatpush2.msra.mxu0 0.0
    %726 = vmatprep.subr.mxu0 0.0
    %727 = vmatpush2.msra.mxu0 0.0
    %728 = vmatprep.subr.mxu0 0.0
    %729 = vmatpush2.msra.mxu0 0.0
    %730 = vmatprep.subr.mxu0 0.0
    %731 = vmatpush2.msra.mxu0 0.0
    %732 = vmatprep.subr.mxu0 0.0
    %733 = vmatpush2.msra.mxu0 0.0
    %734 = vmatprep.subr.mxu0 0.0
    %735 = vmatpush2.msra.mxu0 0.0
    %736 = vmatprep.subr.mxu0 0.0
    %737 = vmatpush2.msra.mxu0 0.0
    %738 = vmatprep.subr.mxu0 0.0
    %739 = vmatpush2.msra.mxu0 0.0
    %740 = vmatprep.subr.mxu0 0.0
    %741 = vmatpush2.msra.mxu0 0.0
    %742 = vmatprep.subr.mxu0 0.0
    %743 = vmatpush2.msra.mxu0 0.0
    %744 = vmatprep.subr.mxu0 0.0
    %745 = vmatpush2.msra.mxu0 0.0
    %746 = vmatprep.subr.mxu0 0.0
    %747 = vmatpush2.msra.mxu0 0.0
    %748 = vmatprep.subr.mxu0 0.0
    %749 = vmatpush2.msra.mxu0 0.0
    %750 = vmatprep.subr.mxu0 0.0
    %751 = vmatpush2.msra.mxu0 0.0
    %752 = vmatprep.subr.mxu0 0.0
    %753 = vmatpush2.msra.mxu0 0.0
    %754 = vmatprep.subr.mxu0 0.0
    %755 = vmatpush2.msra.mxu0 0.0
    %756 = vmatprep.mubr.f32.mxu0 0.0
    %757 = vmatmul.mubr.f32.gmra.mxu0 %v690
    %v758 = vpop.f32.mrf.mxu0
    %v759 = vadd.f32 0.0, %v758
    %v760 = vpop.f32.mrf.mxu0
    %761 = vdwg.mxu0
    %v762 = vadd.f32 %v689, %v759
    %v763 = vmul.f32 %v762, 0.5
    %v764 = vtanh.pop %v763
    %v765 = vmul.f32 %v764, 0.5
    %v766 = vadd.f32 %v765, 0.5
    %v769 = vunpack.c.l.s4 1966171168
    %v770 = vunpack.c.0.s8 %v769
    %v771 = vlaneseq
    %v772 = vshrl.u32 %v771, 7
    %v773 = vsub.s32 %v770, %v772
    %v774 = vrot.slane %v766, %v773
    %v775 = vcombine.high %v774, %v774
    %v777 = vunpack.c.l.s4 1966171168
    %v778 = vunpack.c.0.s8 %v777
    %v779 = vlaneseq
    %v780 = vshrl.u32 %v779, 7
    %v781 = vsub.s32 %v778, %v780
    %v782 = vrot.slane %v774, %v781
    %v784 = vunpack.c.l.s4 1966171168
    %v785 = vunpack.c.0.s8 %v784
    %v786 = vlaneseq
    %v787 = vshrl.u32 %v786, 7
    %v788 = vsub.s32 %v785, %v787
    %v789 = vrot.slane %v775, %v788
    %792 = vst.msk [vmem:[#allocation3 + $0x5] sm:$0x1] %vm172, %v782
    %793 = vst.msk [vmem:[#allocation3 + $0xd] sm:$0x1] %vm172, %v789
    %v794 = vmul.f32 %v766, %v179
    %v795 = vsel %vm182, %v794, 0.0
    %796 = vadd.xlane.f32.xlu0 %v795
    %v797 = vpop.xlane.xlu0 %796
    %v798 = vadd.f32 %v797, %v190
    %800 = vrot.lane.b32.xlu0 %v798, 5
    %v801 = vpop.permute.xlu0 %800
    %vm803 = vcmask 42024
    %804 = vst.msk [vmem:[#allocation5] sm:$0x3] %vm803, %v801
    %806 = vset.pattern.permute.xlu0 0
    %807 = vperm.xlu0 %806, %v38
    %v808 = vpop.permute.xlu0 %807
    %v810 = vmul.f32 %v808, %v58
    %v811 = vadd.f32 %v810, %v65
    %v812 = vsel %vm68, %v766, 0
    %814 = vmatprep.subr.mxu0 0.0
    %815 = vmatpush1.msra.mxu0 0.0
    %816 = vmatprep.subr.mxu0 0.0
    %817 = vmatpush1.msra.mxu0 0.0
    %818 = vmatprep.subr.mxu0 0.0
    %819 = vmatpush1.msra.mxu0 0.0
    %820 = vmatprep.subr.mxu0 0.0
    %821 = vmatpush1.msra.mxu0 0.0
    %822 = vmatprep.subr.mxu0 0.0
    %823 = vmatpush1.msra.mxu0 0.0
    %824 = vmatprep.subr.mxu0 0.0
    %825 = vmatpush1.msra.mxu0 0.0
    %826 = vmatprep.subr.mxu0 0.0
    %827 = vmatpush1.msra.mxu0 0.0
    %828 = vmatprep.subr.mxu0 0.0
    %829 = vmatpush1.msra.mxu0 0.0
    %830 = vmatprep.subr.mxu0 0.0
    %831 = vmatpush1.msra.mxu0 0.0
    %832 = vmatprep.subr.mxu0 0.0
    %833 = vmatpush1.msra.mxu0 0.0
    %834 = vmatprep.subr.mxu0 0.0
    %835 = vmatpush1.msra.mxu0 0.0
    %836 = vmatprep.subr.mxu0 0.0
    %837 = vmatpush1.msra.mxu0 0.0
    %838 = vmatprep.subr.mxu0 0.0
    %839 = vmatpush1.msra.mxu0 %v43
    %840 = vmatprep.subr.mxu0 0.0
    %841 = vmatpush1.msra.mxu0 %v42
    %842 = vmatprep.subr.mxu0 0.0
    %843 = vmatpush1.msra.mxu0 %v41
    %844 = vmatprep.subr.mxu0 0.0
    %845 = vmatpush1.msra.mxu0 %v40
    %846 = vmatprep.subr.mxu0 0.0
    %847 = vmatpush2.msra.mxu0 0.0
    %848 = vmatprep.subr.mxu0 0.0
    %849 = vmatpush2.msra.mxu0 0.0
    %850 = vmatprep.subr.mxu0 0.0
    %851 = vmatpush2.msra.mxu0 0.0
    %852 = vmatprep.subr.mxu0 0.0
    %853 = vmatpush2.msra.mxu0 0.0
    %854 = vmatprep.subr.mxu0 0.0
    %855 = vmatpush2.msra.mxu0 0.0
    %856 = vmatprep.subr.mxu0 0.0
    %857 = vmatpush2.msra.mxu0 0.0
    %858 = vmatprep.subr.mxu0 0.0
    %859 = vmatpush2.msra.mxu0 0.0
    %860 = vmatprep.subr.mxu0 0.0
    %861 = vmatpush2.msra.mxu0 0.0
    %862 = vmatprep.subr.mxu0 0.0
    %863 = vmatpush2.msra.mxu0 0.0
    %864 = vmatprep.subr.mxu0 0.0
    %865 = vmatpush2.msra.mxu0 0.0
    %866 = vmatprep.subr.mxu0 0.0
    %867 = vmatpush2.msra.mxu0 0.0
    %868 = vmatprep.subr.mxu0 0.0
    %869 = vmatpush2.msra.mxu0 0.0
    %870 = vmatprep.subr.mxu0 0.0
    %871 = vmatpush2.msra.mxu0 0.0
    %872 = vmatprep.subr.mxu0 0.0
    %873 = vmatpush2.msra.mxu0 0.0
    %874 = vmatprep.subr.mxu0 0.0
    %875 = vmatpush2.msra.mxu0 0.0
    %876 = vmatprep.subr.mxu0 0.0
    %877 = vmatpush2.msra.mxu0 0.0
    %878 = vmatprep.mubr.f32.mxu0 0.0
    %879 = vmatmul.mubr.f32.gmra.mxu0 %v812
    %v880 = vpop.f32.mrf.mxu0
    %v881 = vadd.f32 0.0, %v880
    %v882 = vpop.f32.mrf.mxu0
    %883 = vdwg.mxu0
    %v884 = vadd.f32 %v811, %v881
    %v885 = vmul.f32 %v884, 0.5
    %v886 = vtanh.pop %v885
    %v887 = vmul.f32 %v886, 0.5
    %v888 = vadd.f32 %v887, 0.5
    %v891 = vunpack.c.l.s4 1966171168
    %v892 = vunpack.c.0.s8 %v891
    %v893 = vlaneseq
    %v894 = vshrl.u32 %v893, 7
    %v895 = vsub.s32 %v892, %v894
    %v896 = vrot.slane %v888, %v895
    %v897 = vcombine.high %v896, %v896
    %v899 = vunpack.c.l.s4 1966171168
    %v900 = vunpack.c.0.s8 %v899
    %v901 = vlaneseq
    %v902 = vshrl.u32 %v901, 7
    %v903 = vsub.s32 %v900, %v902
    %v904 = vrot.slane %v896, %v903
    %v906 = vunpack.c.l.s4 1966171168
    %v907 = vunpack.c.0.s8 %v906
    %v908 = vlaneseq
    %v909 = vshrl.u32 %v908, 7
    %v910 = vsub.s32 %v907, %v909
    %v911 = vrot.slane %v897, %v910
    %914 = vst.msk [vmem:[#allocation3 + $0x6] sm:$0x1] %vm172, %v904
    %915 = vst.msk [vmem:[#allocation3 + $0xe] sm:$0x1] %vm172, %v911
    %v916 = vmul.f32 %v888, %v179
    %v917 = vsel %vm182, %v916, 0.0
    %918 = vadd.xlane.f32.xlu0 %v917
    %v919 = vpop.xlane.xlu0 %918
    %v920 = vadd.f32 %v919, %v190
    %922 = vrot.lane.b32.xlu0 %v920, 6
    %v923 = vpop.permute.xlu0 %922
    %vm925 = vcmask 50224
    %926 = vst.msk [vmem:[#allocation5] sm:$0x3] %vm925, %v923
    %928 = vset.pattern.permute.xlu0 0
    %929 = vperm.xlu0 %928, %v39
    %v930 = vpop.permute.xlu0 %929
    %v932 = vmul.f32 %v930, %v58
    %v933 = vadd.f32 %v932, %v65
    %v934 = vsel %vm68, %v888, 0
    %936 = vmatprep.subr.mxu0 0.0
    %937 = vmatpush1.msra.mxu0 0.0
    %938 = vmatprep.subr.mxu0 0.0
    %939 = vmatpush1.msra.mxu0 0.0
    %940 = vmatprep.subr.mxu0 0.0
    %941 = vmatpush1.msra.mxu0 0.0
    %942 = vmatprep.subr.mxu0 0.0
    %943 = vmatpush1.msra.mxu0 0.0
    %944 = vmatprep.subr.mxu0 0.0
    %945 = vmatpush1.msra.mxu0 0.0
    %946 = vmatprep.subr.mxu0 0.0
    %947 = vmatpush1.msra.mxu0 0.0
    %948 = vmatprep.subr.mxu0 0.0
    %949 = vmatpush1.msra.mxu0 0.0
    %950 = vmatprep.subr.mxu0 0.0
    %951 = vmatpush1.msra.mxu0 0.0
    %952 = vmatprep.subr.mxu0 0.0
    %953 = vmatpush1.msra.mxu0 0.0
    %954 = vmatprep.subr.mxu0 0.0
    %955 = vmatpush1.msra.mxu0 0.0
    %956 = vmatprep.subr.mxu0 0.0
    %957 = vmatpush1.msra.mxu0 0.0
    %958 = vmatprep.subr.mxu0 0.0
    %959 = vmatpush1.msra.mxu0 0.0
    %960 = vmatprep.subr.mxu0 0.0
    %961 = vmatpush1.msra.mxu0 %v43
    %962 = vmatprep.subr.mxu0 0.0
    %963 = vmatpush1.msra.mxu0 %v42
    %964 = vmatprep.subr.mxu0 0.0
    %965 = vmatpush1.msra.mxu0 %v41
    %966 = vmatprep.subr.mxu0 0.0
    %967 = vmatpush1.msra.mxu0 %v40
    %968 = vmatprep.subr.mxu0 0.0
    %969 = vmatpush2.msra.mxu0 0.0
    %970 = vmatprep.subr.mxu0 0.0
    %971 = vmatpush2.msra.mxu0 0.0
    %972 = vmatprep.subr.mxu0 0.0
    %973 = vmatpush2.msra.mxu0 0.0
    %974 = vmatprep.subr.mxu0 0.0
    %975 = vmatpush2.msra.mxu0 0.0
    %976 = vmatprep.subr.mxu0 0.0
    %977 = vmatpush2.msra.mxu0 0.0
    %978 = vmatprep.subr.mxu0 0.0
    %979 = vmatpush2.msra.mxu0 0.0
    %980 = vmatprep.subr.mxu0 0.0
    %981 = vmatpush2.msra.mxu0 0.0
    %982 = vmatprep.subr.mxu0 0.0
    %983 = vmatpush2.msra.mxu0 0.0
    %984 = vmatprep.subr.mxu0 0.0
    %985 = vmatpush2.msra.mxu0 0.0
    %986 = vmatprep.subr.mxu0 0.0
    %987 = vmatpush2.msra.mxu0 0.0
    %988 = vmatprep.subr.mxu0 0.0
    %989 = vmatpush2.msra.mxu0 0.0
    %990 = vmatprep.subr.mxu0 0.0
    %991 = vmatpush2.msra.mxu0 0.0
    %992 = vmatprep.subr.mxu0 0.0
    %993 = vmatpush2.msra.mxu0 0.0
    %994 = vmatprep.subr.mxu0 0.0
    %995 = vmatpush2.msra.mxu0 0.0
    %996 = vmatprep.subr.mxu0 0.0
    %997 = vmatpush2.msra.mxu0 0.0
    %998 = vmatprep.subr.mxu0 0.0
    %999 = vmatpush2.msra.mxu0 0.0
    %1000 = vmatprep.mubr.f32.mxu0 0.0
    %1001 = vmatmul.mubr.f32.gmra.mxu0 %v934
    %v1002 = vpop.f32.mrf.mxu0
    %v1003 = vadd.f32 0.0, %v1002
    %v1004 = vpop.f32.mrf.mxu0
    %1005 = vdwg.mxu0
    %v1006 = vadd.f32 %v933, %v1003
    %v1007 = vmul.f32 %v1006, 0.5
    %v1008 = vtanh.pop %v1007
    %v1009 = vmul.f32 %v1008, 0.5
    %v1010 = vadd.f32 %v1009, 0.5
    %v1013 = vunpack.c.l.s4 1966171168
    %v1014 = vunpack.c.0.s8 %v1013
    %v1015 = vlaneseq
    %v1016 = vshrl.u32 %v1015, 7
    %v1017 = vsub.s32 %v1014, %v1016
    %v1018 = vrot.slane %v1010, %v1017
    %v1019 = vcombine.high %v1018, %v1018
    %v1021 = vunpack.c.l.s4 1966171168
    %v1022 = vunpack.c.0.s8 %v1021
    %v1023 = vlaneseq
    %v1024 = vshrl.u32 %v1023, 7
    %v1025 = vsub.s32 %v1022, %v1024
    %v1026 = vrot.slane %v1018, %v1025
    %v1028 = vunpack.c.l.s4 1966171168
    %v1029 = vunpack.c.0.s8 %v1028
    %v1030 = vlaneseq
    %v1031 = vshrl.u32 %v1030, 7
    %v1032 = vsub.s32 %v1029, %v1031
    %v1033 = vrot.slane %v1019, %v1032
    %1036 = vst.msk [vmem:[#allocation3 + $0x7] sm:$0x1] %vm172, %v1026
    %1037 = vst.msk [vmem:[#allocation3 + $0xf] sm:$0x1] %vm172, %v1033
    %v1038 = vmul.f32 %v1010, %v179
    %v1039 = vsel %vm182, %v1038, 0.0
    %1040 = vadd.xlane.f32.xlu0 %v1039
    %v1041 = vpop.xlane.xlu0 %1040
    %v1042 = vadd.f32 %v1041, %v190
    %1044 = vrot.lane.b32.xlu0 %v1042, 7
    %v1045 = vpop.permute.xlu0 %1044
    %vm1047 = vcmask 58424
    %1048 = vst.msk [vmem:[#allocation5] sm:$0x3] %vm1047, %v1045
    // Predicated region
    $region30: #{rnn_forward.1} parent=1 // pred_check
      _
    $region31: #{rnn_forward.1} parent=1 // pred_check_branch
      %1050 = sbr.rel (0) target = $region33
    $region32: #{rnn_forward.1} parent=1 // pred_region
      %s1052 = ssub.s32 256, 256
      %1053 = vsyncadd [#allocation4], %s1052
      %s1054 = sshll.u32 [#allocation3], 4
      %s1055 = int_to_ptr.vmem [resolvable:$true] %s1054
      %1060 = dma.vmem_to_hbm [thread:$0]  %s1055, 256, %s7, [#allocation4], 128, 128, 8
    $region33: #{rnn_forward.1} parent=1 // pred_fallthru
      _
    // Predicated region
    $region34: #{rnn_forward.1} parent=1 // pred_check
      _
    $region35: #{rnn_forward.1} parent=1 // pred_check_branch
      %1062 = sbr.rel (0) target = $region37
    $region36: #{rnn_forward.1} parent=1 // pred_region
      %s1064 = ssub.s32 32, 32
      %1065 = vsyncadd [#allocation6], %s1064
      %s1067 = sshll.u32 [#allocation5], 4
      %s1068 = int_to_ptr.vmem [resolvable:$true] %s1067
      %1070 = dma.vmem_to_hbm [thread:$0]  %s1068, 32, %s8, [#allocation6]
    $region37: #{rnn_forward.1} parent=1 // pred_fallthru
      _
    // Predicated region
    $region38: #{rnn_forward.1} parent=1 // pred_check
      _
    $region39: #{rnn_forward.1} parent=1 // pred_check_branch
      %1072 = sbr.rel (0) target = $region41
    $region40: #{rnn_forward.1} parent=1 // pred_region
      %1073 = dma.done [#allocation4], 256
    $region41: #{rnn_forward.1} parent=1 // pred_fallthru
      _
    // Predicated region
    $region42: #{rnn_forward.1} parent=1 // pred_check
      _
    $region43: #{rnn_forward.1} parent=1 // pred_check_branch
      %1075 = sbr.rel (0) target = $region45
    $region44: #{rnn_forward.1} parent=1 // pred_region
      %1076 = dma.done [#allocation6], 32
    $region45: #{rnn_forward.1} parent=1 // pred_fallthru
      _
    %1077 = vsyncpa [#allocation4], 1
    %1078 = vsyncpa [#allocation6], 1

</llo_original>
